<compile_context>
chip_gen: v5e
topology: v5e:2x2
jax: 0.10.0
libtpu: 0.0.40
codegen_flags: <defaults>
</compile_context>

<pallas_src>
import functools

import numpy as np
import jax
import jax.numpy as jnp
from jax.experimental import pallas as pl
from jax.experimental.pallas import tpu as pltpu


def _round_up(x, m):
    return ((x + m - 1) // m) * m


def _largest_tile(dim_pad, cap):
    """Largest multiple of 128 that divides dim_pad and is <= cap (>=128)."""
    cap = max(128, min(int(cap), int(dim_pad)))
    cap = (cap // 128) * 128
    for t in range(cap, 0, -128):
        if dim_pad % t == 0:
            return t
    return 128


def _linear_kernel(x_ref, w_ref, b_ref, o_ref):
    """One (F-tile, K-tile) grid step of o = x @ w + b.

    K is the last ("arbitrary") grid axis, so the output block stays
    VMEM-resident across the contraction and is accumulated in place (f32).
    The accumulator is initialized with the broadcast bias at k == 0.
    """
    k = pl.program_id(1)

    @pl.when(k == 0)
    def _():
        o_ref[...] = jnp.broadcast_to(
            b_ref[...].astype(jnp.float32), o_ref.shape
        )

    # bf16 x bf16 MXU matmul with f32 accumulation (weights stored bf16 in HBM).
    o_ref[...] += jnp.dot(
        x_ref[...].astype(jnp.bfloat16),
        w_ref[...],
        preferred_element_type=jnp.float32,
    )


def _linear_pallas(x_pad, w_t_pad, b_pad, *, tk, tn, vmem_limit_bytes):
    """x_pad: (B_pad, K_pad) f32; w_t_pad: (K_pad, F_pad) bf16; b_pad: (1, F_pad) f32."""
    B_pad, K_pad = x_pad.shape
    K_pad_w, F_pad = w_t_pad.shape
    assert K_pad == K_pad_w
    assert K_pad % tk == 0 and F_pad % tn == 0
    assert B_pad % 8 == 0 and tn % 128 == 0 and tk % 128 == 0

    grid = (F_pad // tn, K_pad // tk)  # F (parallel) outer, K (reduction) last
    return pl.pallas_call(
        _linear_kernel,
        out_shape=jax.ShapeDtypeStruct((B_pad, F_pad), jnp.float32),
        grid_spec=pltpu.PrefetchScalarGridSpec(
            num_scalar_prefetch=0,
            grid=grid,
            in_specs=[
                pl.BlockSpec((B_pad, tk), lambda j, k: (0, k)),  # x tile (f32)
                pl.BlockSpec((tk, tn), lambda j, k: (k, j)),     # weight tile (bf16)
                pl.BlockSpec((1, tn), lambda j, k: (0, j)),      # bias tile (f32)
            ],
            out_specs=pl.BlockSpec((B_pad, tn), lambda j, k: (0, j)),
        ),
        compiler_params=pltpu.CompilerParams(
            dimension_semantics=("parallel", "arbitrary"),
            vmem_limit_bytes=int(vmem_limit_bytes),
        ),
    )(x_pad, w_t_pad, b_pad)


@functools.partial(
    jax.jit,
    static_argnames=("in_features", "feature_dim", "k_pad", "f_pad", "tk", "tn"),
)
def _flatten_linear_forward(x2d, w_t_pad, b_pad, *, in_features, feature_dim,
                            k_pad, f_pad, tk, tn):
    B = x2d.shape[0]
    B_pad = _round_up(max(B, 1), 8)
    pad_b = B_pad - B
    pad_k = k_pad - in_features

    x_pad = x2d.astype(jnp.float32)
    if pad_b or pad_k:
        # Only pad the dims that need it (cheap, fused under jit).
        x_pad = jnp.pad(x_pad, ((0, pad_b), (0, pad_k)))

    # Double-buffered VMEM footprint estimate (+ headroom), clamped to a range
    # that is safe on v7x's 64 MiB physical VMEM.
    need = 2 * (B_pad * tk * 4 + tk * tn * 2 + tn * 4 + B_pad * tn * 4)
    need += 2 << 20
    vmem_limit = min(max(need, 24 << 20), 48 << 20)

    out = _linear_pallas(x_pad, w_t_pad, b_pad, tk=tk, tn=tn,
                         vmem_limit_bytes=vmem_limit)
    if pad_b or (f_pad != feature_dim):
        out = out[:B, :feature_dim]
    return out


class FlattenPallas:
    """JAX/Pallas port of lecoro Flatten(Pooling)."""

    def __init__(self, input_shape, feature_dim=None, *, key=None,
                 tk=2048, tn=1024):
        assert len(input_shape) == 3
        self._input_shape = tuple(input_shape)
        in_features = int(np.prod(input_shape))
        self._in_features = in_features

        if feature_dim is None:
            # Identity projection: flatten only.
            self._feature_dim = in_features
            self.weight = None
            self.bias = None
            return

        self._feature_dim = int(feature_dim)
        if key is None:
            key = jax.random.PRNGKey(0)
        kw, kb = jax.random.split(key)
        # Deterministic init mimicking nn.Linear's uniform(-1/sqrt(K), 1/sqrt(K)).
        bound = 1.0 / float(np.sqrt(in_features))
        # PyTorch nn.Linear layout (F, K), kept f32 for reference / interop.
        self.weight = jax.random.uniform(
            kw, (self._feature_dim, in_features), jnp.float32, -bound, bound
        )
        self.bias = jax.random.uniform(
            kb, (self._feature_dim,), jnp.float32, -bound, bound
        )

        # --- Tile selection -------------------------------------------------
        # Pad K / F only to 128; choose tiles as the largest multiples of 128
        # that divide the padded extents (<= caps) so no zero weight rows are
        # streamed and divisibility always holds.
        self._K_pad = _round_up(in_features, 128)
        self._F_pad = _round_up(self._feature_dim, 128)
        self._tk = _largest_tile(self._K_pad, tk)
        self._tn = _largest_tile(self._F_pad, tn)

        # v7x megacore: prefer >= 2 F blocks so both TensorCores share the
        # weight stream, but only if each half-tile stays a multi-MiB DMA
        # (otherwise per-step overhead dominates on 1-TC gens).
        if self._F_pad // self._tn < 2 and self._F_pad >= 256:
            tn_half = _largest_tile(self._F_pad, self._F_pad // 2)
            if self._tk * tn_half * 2 >= (1 << 20):
                self._tn = tn_half

        # Pre-transpose + zero-pad the weight ONCE, stored bf16 (halves the
        # HBM weight-streaming traffic; f32 accumulate keeps accuracy).
        w_t = jnp.zeros((self._K_pad, self._F_pad), jnp.float32)
        w_t = w_t.at[:in_features, : self._feature_dim].set(self.weight.T)
        self._w_t_pad = w_t.astype(jnp.bfloat16)
        b = jnp.zeros((1, self._F_pad), jnp.float32)
        b = b.at[0, : self._feature_dim].set(self.bias)
        self._b_pad = b

    @property
    def feature_dim(self):
        return self._feature_dim

    def output_shape(self, input_shape=None):
        return [self._feature_dim]

    def __call__(self, x):
        # Flatten all dims except batch (glue, plain JAX; row-major == torch.flatten).
        B = x.shape[0]
        x2d = x.reshape(B, -1)
        if self.weight is None:
            return x2d

        assert x2d.shape[1] == self._in_features
        return _flatten_linear_forward(
            x2d, self._w_t_pad, self._b_pad,
            in_features=self._in_features,
            feature_dim=self._feature_dim,
            k_pad=self._K_pad, f_pad=self._F_pad,
            tk=self._tk, tn=self._tn,
        )


if __name__ == "__main__":
    key = jax.random.PRNGKey(0)
    kx, kp = jax.random.split(key)

    # Small shapes consistent with a conv-feature input: (B, C, H, W)
    B, C, H, W = 2, 4, 16, 16
    x = jax.random.normal(kx, (B, C, H, W), jnp.float32)

    # --- Linear-projection path (feature_dim given): Pallas matmul kernel ---
    feature_dim = 32
    mod = FlattenPallas((C, H, W), feature_dim, key=kp)
    out = jax.block_until_ready(mod(x))
    assert out.shape == (B, feature_dim), out.shape

    # Reference in plain JAX (f32 weights); kernel uses bf16 weights + bf16
    # activations with f32 accumulation, so compare at bf16-appropriate tol.
    ref = x.reshape(B, -1) @ mod.weight.T + mod.bias
    np.testing.assert_allclose(np.asarray(out), np.asarray(ref), rtol=2e-2, atol=2e-2)

    # --- Identity path (feature_dim=None): pure flatten ---
    mod_id = FlattenPallas((C, H, W), None)
    out_id = jax.block_until_ready(mod_id(x))
    assert out_id.shape == (B, C * H * W)
    np.testing.assert_allclose(
        np.asarray(out_id), np.asarray(x.reshape(B, -1)), rtol=0, atol=0
    )

    print("KERNEL_OK")
</pallas_src>

<mosaic_0001>
module attributes {stable_mosaic.version = 11 : i64} {
  func.func @_linear_kernel(%arg0: i32, %arg1: i32, %arg2: memref<8x1024xf32, #tpu.memory_space<vmem>>, %arg3: memref<1024x128xbf16, #tpu.memory_space<vmem>>, %arg4: memref<1x128xf32, #tpu.memory_space<vmem>>, %arg5: memref<8x128xf32, #tpu.memory_space<vmem>>) attributes {dimension_semantics = [#tpu.dimension_semantics<parallel>, #tpu.dimension_semantics<arbitrary>], iteration_bounds = array<i64: 1, 1>, scalar_prefetch = 0 : i64, scratch_operands = 0 : i64, tpu.core_type = #tpu.core_type<tc>, window_params = [{transform_indices = @transform_0, window_bounds = array<i64: 8, 1024>}, {transform_indices = @transform_1, window_bounds = array<i64: 1024, 128>}, {transform_indices = @transform_2, window_bounds = array<i64: 1, 128>}, {transform_indices = @transform_3, window_bounds = array<i64: 8, 128>}]} {
    %c0_i32 = arith.constant 0 : i32
    %0 = arith.cmpi eq, %arg1, %c0_i32 : i32
    %1 = arith.extui %0 : i1 to i32
    %c0_i32_0 = arith.constant 0 : i32
    %2 = arith.cmpi ne, %1, %c0_i32_0 : i32
    scf.if %2 {
      %c0_8 = arith.constant 0 : index
      %c0_9 = arith.constant 0 : index
      %10 = vector.load %arg4[%c0_8, %c0_9] : memref<1x128xf32, #tpu.memory_space<vmem>>, vector<1x128xf32>
      %11 = vector.shape_cast %10 : vector<1x128xf32> to vector<1x128xf32>
      %12 = vector.broadcast %11 : vector<1x128xf32> to vector<8x128xf32>
      %c0_10 = arith.constant 0 : index
      %c0_11 = arith.constant 0 : index
      %13 = vector.load %arg5[%c0_10, %c0_11] : memref<8x128xf32, #tpu.memory_space<vmem>>, vector<8x128xf32>
      tpu.vector_store %arg5[%c0_10, %c0_11], %12 {strides = array<i32>} : memref<8x128xf32, #tpu.memory_space<vmem>>, vector<8x128xf32>,
    } else {
    }
    %c0 = arith.constant 0 : index
    %c0_1 = arith.constant 0 : index
    %3 = vector.load %arg5[%c0, %c0_1] : memref<8x128xf32, #tpu.memory_space<vmem>>, vector<8x128xf32>
    %c0_2 = arith.constant 0 : index
    %c0_3 = arith.constant 0 : index
    %4 = vector.load %arg2[%c0_2, %c0_3] : memref<8x1024xf32, #tpu.memory_space<vmem>>, vector<8x1024xf32>
    %5 = arith.truncf %4 : vector<8x1024xf32> to vector<8x1024xbf16>
    %c0_4 = arith.constant 0 : index
    %c0_5 = arith.constant 0 : index
    %6 = vector.load %arg3[%c0_4, %c0_5] : memref<1024x128xbf16, #tpu.memory_space<vmem>>, vector<1024x128xbf16>
    %cst = arith.constant dense<0.000000e+00> : vector<8x128xf32>
    %7 = tpu.matmul %5, %6, %cst {dimension_numbers = #tpu.dot_dimension_numbers<[1], [0], [0], [1], [0, 0, 1, 1], [], []>} : vector<8x1024xbf16>, vector<1024x128xbf16>, vector<8x128xf32> -> vector<8x128xf32>
    %8 = arith.addf %3, %7 : vector<8x128xf32>
    %c0_6 = arith.constant 0 : index
    %c0_7 = arith.constant 0 : index
    %9 = vector.load %arg5[%c0_6, %c0_7] : memref<8x128xf32, #tpu.memory_space<vmem>>, vector<8x128xf32>
    tpu.vector_store %arg5[%c0_6, %c0_7], %8 {strides = array<i32>} : memref<8x128xf32, #tpu.memory_space<vmem>>, vector<8x128xf32>,
    return
  }
  func.func @transform_0(%arg0: i32, %arg1: i32) -> (i32, i32) {
    %c0_i32 = arith.constant 0 : i32
    %c0_i32_0 = arith.constant 0 : i32
    return %c0_i32, %arg1 : i32, i32
  }
  func.func @transform_1(%arg0: i32, %arg1: i32) -> (i32, i32) {
    %c0_i32 = arith.constant 0 : i32
    return %arg1, %arg0 : i32, i32
  }
  func.func @transform_2(%arg0: i32, %arg1: i32) -> (i32, i32) {
    %c0_i32 = arith.constant 0 : i32
    %c0_i32_0 = arith.constant 0 : i32
    return %c0_i32, %arg0 : i32, i32
  }
  func.func @transform_3(%arg0: i32, %arg1: i32) -> (i32, i32) {
    %c0_i32 = arith.constant 0 : i32
    %c0_i32_0 = arith.constant 0 : i32
    return %c0_i32, %arg0 : i32, i32
  }
}

</mosaic_0001>

<llo_original>
// kernel: _flatten_linear_forward.1
$region0: #{_flatten_linear_forward.1}
  #allocation0 [shape = 'u32[]', space=smem, size = 0x4, offset = 0x4, fixed_abs, tag = 'smem constant byte address 0x4 - core index']
  #allocation1 [shape = 'u32[72,128]{1,0:T(1,128)}', space=vmem, size = 0x9000, scoped, tag = 'internal scratch']
  %s0 = inlined_call_operand.vmem [shape: f32[8,1024], index: 0, kind: input, shape index: {}]
  %s1 = inlined_call_operand.hbm [shape: bf16[1024,128], index: 1, kind: input, shape index: {}]
  %s2 = inlined_call_operand.vmem [shape: f32[1,128], index: 2, kind: input, shape index: {}]
  %s3 = inlined_call_operand.vmem [shape: f32[8,128], index: 3, kind: output, shape index: {}]
  %s4 = sld [smem:[#allocation0]]
  $region30: #{_flatten_linear_forward.1} parent=0
    _
  %s6 = ssub.s32 1, %s4
  %s7 = scalar_select 0, %s6, %s4
  $region1: #{_flatten_linear_forward.1} parent=0
    #allocation2 [shape = 'u8[262144]{0}', space=vmem, size = 0x40000, scoped, tag = 'input window, operand 1, single buffered']
    #allocation3 [shape = 's32[1]{0}', space=sflag, size = 0x4, scoped, tag = 'scoped memory for _flatten_linear_forward.1']
    %8 = vsyncpa [#allocation3], 0
    // Predicated region
    $region2: #{_flatten_linear_forward.1} parent=1 // pred_check
      _
    $region3: #{_flatten_linear_forward.1} parent=1 // pred_check_branch
      %10 = sbr.rel (0) target = $region5
    $region4: #{_flatten_linear_forward.1} parent=1 // pred_region
      _
    $region5: #{_flatten_linear_forward.1} parent=1 // pred_fallthru
      _
    // Predicated region
    $region6: #{_flatten_linear_forward.1} parent=1 // pred_check
      _
    $region7: #{_flatten_linear_forward.1} parent=1 // pred_check_branch
      %12 = sbr.rel (0) target = $region9
    $region8: #{_flatten_linear_forward.1} parent=1 // pred_region
      %14 = vsyncadd [#allocation3], 0
      %s15 = sshll.u32 %s1, 4
      %s16 = int_to_ptr.hbm [resolvable:$true] %s15
      %s17 = sshll.u32 [#allocation2], 4
      %s18 = int_to_ptr.vmem [resolvable:$true] %s17
      %23 = dma.hbm_to_vmem [thread:$0]  %s16, 8192, %s18, [#allocation3], 64, 64, 4
    $region9: #{_flatten_linear_forward.1} parent=1 // pred_fallthru
      _
    // Predicated region
    $region10: #{_flatten_linear_forward.1} parent=1 // pred_check
      _
    $region11: #{_flatten_linear_forward.1} parent=1 // pred_check_branch
      %25 = sbr.rel (0) target = $region13
    $region12: #{_flatten_linear_forward.1} parent=1 // pred_region
      _
    $region13: #{_flatten_linear_forward.1} parent=1 // pred_fallthru
      _
    // Predicated region
    $region14: #{_flatten_linear_forward.1} parent=1 // pred_check
      _
    $region15: #{_flatten_linear_forward.1} parent=1 // pred_check_branch
      %27 = sbr.rel (0) target = $region17
    $region16: #{_flatten_linear_forward.1} parent=1 // pred_region
      %29 = dma.done [#allocation3], 8192
    $region17: #{_flatten_linear_forward.1} parent=1 // pred_fallthru
      _
    %p30 = scmp.eq.s32.totalorder 0, 0
    // Predicated region
    $region18: #{_flatten_linear_forward.1} parent=1 // pred_check
      %p31 = pneg %p30
    $region19: #{_flatten_linear_forward.1} parent=1 // pred_check_branch
      %33 = sbr.rel (%p31) target = $region21
    $region20: #{_flatten_linear_forward.1} parent=1 // pred_region
      %v34 = vld [vmem:[%s2] sm:$0x1]
      %v36 = vperm.slane %v34, 0
      %38 = vst [vmem:[%s3] sm:$0xff] %v36
    $region21: #{_flatten_linear_forward.1} parent=1 // pred_fallthru
      _
    %v39 = vld [vmem:[%s3] sm:$0xff]
    %v40 = vld [vmem:[%s0] sm:$0xff]
    %v41 = vld [vmem:[%s0 + $0x8] sm:$0xff]
    %v42 = vld [vmem:[%s0 + $0x10] sm:$0xff]
    %v43 = vld [vmem:[%s0 + $0x18] sm:$0xff]
    %v44 = vld [vmem:[%s0 + $0x20] sm:$0xff]
    %v45 = vld [vmem:[%s0 + $0x28] sm:$0xff]
    %v46 = vld [vmem:[%s0 + $0x30] sm:$0xff]
    %v47 = vld [vmem:[%s0 + $0x38] sm:$0xff]
    %v48 = vpack.c.bf16 %v40, %v40
    %v49 = vpack.c.bf16 %v41, %v41
    %v50 = vpack.c.bf16 %v42, %v42
    %v51 = vpack.c.bf16 %v43, %v43
    %v52 = vpack.c.bf16 %v44, %v44
    %v53 = vpack.c.bf16 %v45, %v45
    %v54 = vpack.c.bf16 %v46, %v46
    %v55 = vpack.c.bf16 %v47, %v47
    %v56 = vld [vmem:[#allocation2] sm:$0xf]
    %v57 = vld [vmem:[#allocation2 + $0x4] sm:$0xf]
    %v58 = vld [vmem:[#allocation2 + $0x8] sm:$0xf]
    %v59 = vld [vmem:[#allocation2 + $0xc] sm:$0xf]
    %v60 = vld [vmem:[#allocation2 + $0x10] sm:$0xf]
    %v61 = vld [vmem:[#allocation2 + $0x14] sm:$0xf]
    %v62 = vld [vmem:[#allocation2 + $0x18] sm:$0xf]
    %v63 = vld [vmem:[#allocation2 + $0x1c] sm:$0xf]
    %v64 = vld [vmem:[#allocation2 + $0x20] sm:$0xf]
    %v65 = vld [vmem:[#allocation2 + $0x24] sm:$0xf]
    %v66 = vld [vmem:[#allocation2 + $0x28] sm:$0xf]
    %v67 = vld [vmem:[#allocation2 + $0x2c] sm:$0xf]
    %v68 = vld [vmem:[#allocation2 + $0x30] sm:$0xf]
    %v69 = vld [vmem:[#allocation2 + $0x34] sm:$0xf]
    %v70 = vld [vmem:[#allocation2 + $0x38] sm:$0xf]
    %v71 = vld [vmem:[#allocation2 + $0x3c] sm:$0xf]
    %v72 = vld [vmem:[#allocation2 + $0x40] sm:$0xf]
    %v73 = vld [vmem:[#allocation2 + $0x44] sm:$0xf]
    %v74 = vld [vmem:[#allocation2 + $0x48] sm:$0xf]
    %v75 = vld [vmem:[#allocation2 + $0x4c] sm:$0xf]
    %v76 = vld [vmem:[#allocation2 + $0x50] sm:$0xf]
    %v77 = vld [vmem:[#allocation2 + $0x54] sm:$0xf]
    %v78 = vld [vmem:[#allocation2 + $0x58] sm:$0xf]
    %v79 = vld [vmem:[#allocation2 + $0x5c] sm:$0xf]
    %v80 = vld [vmem:[#allocation2 + $0x60] sm:$0xf]
    %v81 = vld [vmem:[#allocation2 + $0x64] sm:$0xf]
    %v82 = vld [vmem:[#allocation2 + $0x68] sm:$0xf]
    %v83 = vld [vmem:[#allocation2 + $0x6c] sm:$0xf]
    %v84 = vld [vmem:[#allocation2 + $0x70] sm:$0xf]
    %v85 = vld [vmem:[#allocation2 + $0x74] sm:$0xf]
    %v86 = vld [vmem:[#allocation2 + $0x78] sm:$0xf]
    %v87 = vld [vmem:[#allocation2 + $0x7c] sm:$0xf]
    %v88 = vld [vmem:[#allocation2 + $0x80] sm:$0xf]
    %v89 = vld [vmem:[#allocation2 + $0x84] sm:$0xf]
    %v90 = vld [vmem:[#allocation2 + $0x88] sm:$0xf]
    %v91 = vld [vmem:[#allocation2 + $0x8c] sm:$0xf]
    %v92 = vld [vmem:[#allocation2 + $0x90] sm:$0xf]
    %v93 = vld [vmem:[#allocation2 + $0x94] sm:$0xf]
    %v94 = vld [vmem:[#allocation2 + $0x98] sm:$0xf]
    %v95 = vld [vmem:[#allocation2 + $0x9c] sm:$0xf]
    %v96 = vld [vmem:[#allocation2 + $0xa0] sm:$0xf]
    %v97 = vld [vmem:[#allocation2 + $0xa4] sm:$0xf]
    %v98 = vld [vmem:[#allocation2 + $0xa8] sm:$0xf]
    %v99 = vld [vmem:[#allocation2 + $0xac] sm:$0xf]
    %v100 = vld [vmem:[#allocation2 + $0xb0] sm:$0xf]
    %v101 = vld [vmem:[#allocation2 + $0xb4] sm:$0xf]
    %v102 = vld [vmem:[#allocation2 + $0xb8] sm:$0xf]
    %v103 = vld [vmem:[#allocation2 + $0xbc] sm:$0xf]
    %v104 = vld [vmem:[#allocation2 + $0xc0] sm:$0xf]
    %v105 = vld [vmem:[#allocation2 + $0xc4] sm:$0xf]
    %v106 = vld [vmem:[#allocation2 + $0xc8] sm:$0xf]
    %v107 = vld [vmem:[#allocation2 + $0xcc] sm:$0xf]
    %v108 = vld [vmem:[#allocation2 + $0xd0] sm:$0xf]
    %v109 = vld [vmem:[#allocation2 + $0xd4] sm:$0xf]
    %v110 = vld [vmem:[#allocation2 + $0xd8] sm:$0xf]
    %v111 = vld [vmem:[#allocation2 + $0xdc] sm:$0xf]
    %v112 = vld [vmem:[#allocation2 + $0xe0] sm:$0xf]
    %v113 = vld [vmem:[#allocation2 + $0xe4] sm:$0xf]
    %v114 = vld [vmem:[#allocation2 + $0xe8] sm:$0xf]
    %v115 = vld [vmem:[#allocation2 + $0xec] sm:$0xf]
    %v116 = vld [vmem:[#allocation2 + $0xf0] sm:$0xf]
    %v117 = vld [vmem:[#allocation2 + $0xf4] sm:$0xf]
    %v118 = vld [vmem:[#allocation2 + $0xf8] sm:$0xf]
    %v119 = vld [vmem:[#allocation2 + $0xfc] sm:$0xf]
    %v120 = vld [vmem:[#allocation2 + $0x100] sm:$0xf]
    %v121 = vld [vmem:[#allocation2 + $0x104] sm:$0xf]
    %v122 = vld [vmem:[#allocation2 + $0x108] sm:$0xf]
    %v123 = vld [vmem:[#allocation2 + $0x10c] sm:$0xf]
    %v124 = vld [vmem:[#allocation2 + $0x110] sm:$0xf]
    %v125 = vld [vmem:[#allocation2 + $0x114] sm:$0xf]
    %v126 = vld [vmem:[#allocation2 + $0x118] sm:$0xf]
    %v127 = vld [vmem:[#allocation2 + $0x11c] sm:$0xf]
    %v128 = vld [vmem:[#allocation2 + $0x120] sm:$0xf]
    %v129 = vld [vmem:[#allocation2 + $0x124] sm:$0xf]
    %v130 = vld [vmem:[#allocation2 + $0x128] sm:$0xf]
    %v131 = vld [vmem:[#allocation2 + $0x12c] sm:$0xf]
    %v132 = vld [vmem:[#allocation2 + $0x130] sm:$0xf]
    %v133 = vld [vmem:[#allocation2 + $0x134] sm:$0xf]
    %v134 = vld [vmem:[#allocation2 + $0x138] sm:$0xf]
    %v135 = vld [vmem:[#allocation2 + $0x13c] sm:$0xf]
    %v136 = vld [vmem:[#allocation2 + $0x140] sm:$0xf]
    %v137 = vld [vmem:[#allocation2 + $0x144] sm:$0xf]
    %v138 = vld [vmem:[#allocation2 + $0x148] sm:$0xf]
    %v139 = vld [vmem:[#allocation2 + $0x14c] sm:$0xf]
    %v140 = vld [vmem:[#allocation2 + $0x150] sm:$0xf]
    %v141 = vld [vmem:[#allocation2 + $0x154] sm:$0xf]
    %v142 = vld [vmem:[#allocation2 + $0x158] sm:$0xf]
    %v143 = vld [vmem:[#allocation2 + $0x15c] sm:$0xf]
    %v144 = vld [vmem:[#allocation2 + $0x160] sm:$0xf]
    %v145 = vld [vmem:[#allocation2 + $0x164] sm:$0xf]
    %v146 = vld [vmem:[#allocation2 + $0x168] sm:$0xf]
    %v147 = vld [vmem:[#allocation2 + $0x16c] sm:$0xf]
    %v148 = vld [vmem:[#allocation2 + $0x170] sm:$0xf]
    %v149 = vld [vmem:[#allocation2 + $0x174] sm:$0xf]
    %v150 = vld [vmem:[#allocation2 + $0x178] sm:$0xf]
    %v151 = vld [vmem:[#allocation2 + $0x17c] sm:$0xf]
    %v152 = vld [vmem:[#allocation2 + $0x180] sm:$0xf]
    %v153 = vld [vmem:[#allocation2 + $0x184] sm:$0xf]
    %v154 = vld [vmem:[#allocation2 + $0x188] sm:$0xf]
    %v155 = vld [vmem:[#allocation2 + $0x18c] sm:$0xf]
    %v156 = vld [vmem:[#allocation2 + $0x190] sm:$0xf]
    %v157 = vld [vmem:[#allocation2 + $0x194] sm:$0xf]
    %v158 = vld [vmem:[#allocation2 + $0x198] sm:$0xf]
    %v159 = vld [vmem:[#allocation2 + $0x19c] sm:$0xf]
    %v160 = vld [vmem:[#allocation2 + $0x1a0] sm:$0xf]
    %v161 = vld [vmem:[#allocation2 + $0x1a4] sm:$0xf]
    %v162 = vld [vmem:[#allocation2 + $0x1a8] sm:$0xf]
    %v163 = vld [vmem:[#allocation2 + $0x1ac] sm:$0xf]
    %v164 = vld [vmem:[#allocation2 + $0x1b0] sm:$0xf]
    %v165 = vld [vmem:[#allocation2 + $0x1b4] sm:$0xf]
    %v166 = vld [vmem:[#allocation2 + $0x1b8] sm:$0xf]
    %v167 = vld [vmem:[#allocation2 + $0x1bc] sm:$0xf]
    %v168 = vld [vmem:[#allocation2 + $0x1c0] sm:$0xf]
    %v169 = vld [vmem:[#allocation2 + $0x1c4] sm:$0xf]
    %v170 = vld [vmem:[#allocation2 + $0x1c8] sm:$0xf]
    %v171 = vld [vmem:[#allocation2 + $0x1cc] sm:$0xf]
    %v172 = vld [vmem:[#allocation2 + $0x1d0] sm:$0xf]
    %v173 = vld [vmem:[#allocation2 + $0x1d4] sm:$0xf]
    %v174 = vld [vmem:[#allocation2 + $0x1d8] sm:$0xf]
    %v175 = vld [vmem:[#allocation2 + $0x1dc] sm:$0xf]
    %v176 = vld [vmem:[#allocation2 + $0x1e0] sm:$0xf]
    %v177 = vld [vmem:[#allocation2 + $0x1e4] sm:$0xf]
    %v178 = vld [vmem:[#allocation2 + $0x1e8] sm:$0xf]
    %v179 = vld [vmem:[#allocation2 + $0x1ec] sm:$0xf]
    %v180 = vld [vmem:[#allocation2 + $0x1f0] sm:$0xf]
    %v181 = vld [vmem:[#allocation2 + $0x1f4] sm:$0xf]
    %v182 = vld [vmem:[#allocation2 + $0x1f8] sm:$0xf]
    %v183 = vld [vmem:[#allocation2 + $0x1fc] sm:$0xf]
    %v312 = vunpack.c.l.b16 %v56
    %v313 = vunpack.c.l.b16 %v57
    %v314 = vunpack.c.l.b16 %v58
    %v315 = vunpack.c.l.b16 %v59
    %v316 = vunpack.c.l.b16 %v60
    %v317 = vunpack.c.l.b16 %v61
    %v318 = vunpack.c.l.b16 %v62
    %v319 = vunpack.c.l.b16 %v63
    %v320 = vunpack.c.l.b16 %v64
    %v321 = vunpack.c.l.b16 %v65
    %v322 = vunpack.c.l.b16 %v66
    %v323 = vunpack.c.l.b16 %v67
    %v324 = vunpack.c.l.b16 %v68
    %v325 = vunpack.c.l.b16 %v69
    %v326 = vunpack.c.l.b16 %v70
    %v327 = vunpack.c.l.b16 %v71
    %v328 = vunpack.c.l.b16 %v72
    %v329 = vunpack.c.l.b16 %v73
    %v330 = vunpack.c.l.b16 %v74
    %v331 = vunpack.c.l.b16 %v75
    %v332 = vunpack.c.l.b16 %v76
    %v333 = vunpack.c.l.b16 %v77
    %v334 = vunpack.c.l.b16 %v78
    %v335 = vunpack.c.l.b16 %v79
    %v336 = vunpack.c.l.b16 %v80
    %v337 = vunpack.c.l.b16 %v81
    %v338 = vunpack.c.l.b16 %v82
    %v339 = vunpack.c.l.b16 %v83
    %v340 = vunpack.c.l.b16 %v84
    %v341 = vunpack.c.l.b16 %v85
    %v342 = vunpack.c.l.b16 %v86
    %v343 = vunpack.c.l.b16 %v87
    %v344 = vunpack.c.l.b16 %v88
    %v345 = vunpack.c.l.b16 %v89
    %v346 = vunpack.c.l.b16 %v90
    %v347 = vunpack.c.l.b16 %v91
    %v348 = vunpack.c.l.b16 %v92
    %v349 = vunpack.c.l.b16 %v93
    %v350 = vunpack.c.l.b16 %v94
    %v351 = vunpack.c.l.b16 %v95
    %v352 = vunpack.c.l.b16 %v96
    %v353 = vunpack.c.l.b16 %v97
    %v354 = vunpack.c.l.b16 %v98
    %v355 = vunpack.c.l.b16 %v99
    %v356 = vunpack.c.l.b16 %v100
    %v357 = vunpack.c.l.b16 %v101
    %v358 = vunpack.c.l.b16 %v102
    %v359 = vunpack.c.l.b16 %v103
    %v360 = vunpack.c.l.b16 %v104
    %v361 = vunpack.c.l.b16 %v105
    %v362 = vunpack.c.l.b16 %v106
    %v363 = vunpack.c.l.b16 %v107
    %v364 = vunpack.c.l.b16 %v108
    %v365 = vunpack.c.l.b16 %v109
    %v366 = vunpack.c.l.b16 %v110
    %v367 = vunpack.c.l.b16 %v111
    %v368 = vunpack.c.l.b16 %v112
    %v369 = vunpack.c.l.b16 %v113
    %v370 = vunpack.c.l.b16 %v114
    %v371 = vunpack.c.l.b16 %v115
    %v372 = vunpack.c.l.b16 %v116
    %v373 = vunpack.c.l.b16 %v117
    %v374 = vunpack.c.l.b16 %v118
    %v375 = vunpack.c.l.b16 %v119
    %v376 = vunpack.c.l.b16 %v120
    %v377 = vunpack.c.l.b16 %v121
    %v378 = vunpack.c.l.b16 %v122
    %v379 = vunpack.c.l.b16 %v123
    %v380 = vunpack.c.l.b16 %v124
    %v381 = vunpack.c.l.b16 %v125
    %v382 = vunpack.c.l.b16 %v126
    %v383 = vunpack.c.l.b16 %v127
    %v384 = vunpack.c.l.b16 %v128
    %v385 = vunpack.c.l.b16 %v129
    %v386 = vunpack.c.l.b16 %v130
    %v387 = vunpack.c.l.b16 %v131
    %v388 = vunpack.c.l.b16 %v132
    %v389 = vunpack.c.l.b16 %v133
    %v390 = vunpack.c.l.b16 %v134
    %v391 = vunpack.c.l.b16 %v135
    %v392 = vunpack.c.l.b16 %v136
    %v393 = vunpack.c.l.b16 %v137
    %v394 = vunpack.c.l.b16 %v138
    %v395 = vunpack.c.l.b16 %v139
    %v396 = vunpack.c.l.b16 %v140
    %v397 = vunpack.c.l.b16 %v141
    %v398 = vunpack.c.l.b16 %v142
    %v399 = vunpack.c.l.b16 %v143
    %v400 = vunpack.c.l.b16 %v144
    %v401 = vunpack.c.l.b16 %v145
    %v402 = vunpack.c.l.b16 %v146
    %v403 = vunpack.c.l.b16 %v147
    %v404 = vunpack.c.l.b16 %v148
    %v405 = vunpack.c.l.b16 %v149
    %v406 = vunpack.c.l.b16 %v150
    %v407 = vunpack.c.l.b16 %v151
    %v408 = vunpack.c.l.b16 %v152
    %v409 = vunpack.c.l.b16 %v153
    %v410 = vunpack.c.l.b16 %v154
    %v411 = vunpack.c.l.b16 %v155
    %v412 = vunpack.c.l.b16 %v156
    %v413 = vunpack.c.l.b16 %v157
    %v414 = vunpack.c.l.b16 %v158
    %v415 = vunpack.c.l.b16 %v159
    %v416 = vunpack.c.l.b16 %v160
    %v417 = vunpack.c.l.b16 %v161
    %v418 = vunpack.c.l.b16 %v162
    %v419 = vunpack.c.l.b16 %v163
    %v420 = vunpack.c.l.b16 %v164
    %v421 = vunpack.c.l.b16 %v165
    %v422 = vunpack.c.l.b16 %v166
    %v423 = vunpack.c.l.b16 %v167
    %v424 = vunpack.c.l.b16 %v168
    %v425 = vunpack.c.l.b16 %v169
    %v426 = vunpack.c.l.b16 %v170
    %v427 = vunpack.c.l.b16 %v171
    %v428 = vunpack.c.l.b16 %v172
    %v429 = vunpack.c.l.b16 %v173
    %v430 = vunpack.c.l.b16 %v174
    %v431 = vunpack.c.l.b16 %v175
    %v432 = vunpack.c.l.b16 %v176
    %v433 = vunpack.c.l.b16 %v177
    %v434 = vunpack.c.l.b16 %v178
    %v435 = vunpack.c.l.b16 %v179
    %v436 = vunpack.c.l.b16 %v180
    %v437 = vunpack.c.l.b16 %v181
    %v438 = vunpack.c.l.b16 %v182
    %v439 = vunpack.c.l.b16 %v183
    %v440 = vpack.c.b16 %v313, %v312
    %v441 = vpack.c.b16 %v315, %v314
    %v442 = vpack.c.b16 %v317, %v316
    %v443 = vpack.c.b16 %v319, %v318
    %v444 = vpack.c.b16 %v321, %v320
    %v445 = vpack.c.b16 %v323, %v322
    %v446 = vpack.c.b16 %v325, %v324
    %v447 = vpack.c.b16 %v327, %v326
    %v448 = vpack.c.b16 %v329, %v328
    %v449 = vpack.c.b16 %v331, %v330
    %v450 = vpack.c.b16 %v333, %v332
    %v451 = vpack.c.b16 %v335, %v334
    %v452 = vpack.c.b16 %v337, %v336
    %v453 = vpack.c.b16 %v339, %v338
    %v454 = vpack.c.b16 %v341, %v340
    %v455 = vpack.c.b16 %v343, %v342
    %v456 = vpack.c.b16 %v345, %v344
    %v457 = vpack.c.b16 %v347, %v346
    %v458 = vpack.c.b16 %v349, %v348
    %v459 = vpack.c.b16 %v351, %v350
    %v460 = vpack.c.b16 %v353, %v352
    %v461 = vpack.c.b16 %v355, %v354
    %v462 = vpack.c.b16 %v357, %v356
    %v463 = vpack.c.b16 %v359, %v358
    %v464 = vpack.c.b16 %v361, %v360
    %v465 = vpack.c.b16 %v363, %v362
    %v466 = vpack.c.b16 %v365, %v364
    %v467 = vpack.c.b16 %v367, %v366
    %v468 = vpack.c.b16 %v369, %v368
    %v469 = vpack.c.b16 %v371, %v370
    %v470 = vpack.c.b16 %v373, %v372
    %v471 = vpack.c.b16 %v375, %v374
    %v472 = vpack.c.b16 %v377, %v376
    %v473 = vpack.c.b16 %v379, %v378
    %v474 = vpack.c.b16 %v381, %v380
    %v475 = vpack.c.b16 %v383, %v382
    %v476 = vpack.c.b16 %v385, %v384
    %v477 = vpack.c.b16 %v387, %v386
    %v478 = vpack.c.b16 %v389, %v388
    %v479 = vpack.c.b16 %v391, %v390
    %v480 = vpack.c.b16 %v393, %v392
    %v481 = vpack.c.b16 %v395, %v394
    %v482 = vpack.c.b16 %v397, %v396
    %v483 = vpack.c.b16 %v399, %v398
    %v484 = vpack.c.b16 %v401, %v400
    %v485 = vpack.c.b16 %v403, %v402
    %v486 = vpack.c.b16 %v405, %v404
    %v487 = vpack.c.b16 %v407, %v406
    %v488 = vpack.c.b16 %v409, %v408
    %v489 = vpack.c.b16 %v411, %v410
    %v490 = vpack.c.b16 %v413, %v412
    %v491 = vpack.c.b16 %v415, %v414
    %v492 = vpack.c.b16 %v417, %v416
    %v493 = vpack.c.b16 %v419, %v418
    %v494 = vpack.c.b16 %v421, %v420
    %v495 = vpack.c.b16 %v423, %v422
    %v496 = vpack.c.b16 %v425, %v424
    %v497 = vpack.c.b16 %v427, %v426
    %v498 = vpack.c.b16 %v429, %v428
    %v499 = vpack.c.b16 %v431, %v430
    %v500 = vpack.c.b16 %v433, %v432
    %v501 = vpack.c.b16 %v435, %v434
    %v502 = vpack.c.b16 %v437, %v436
    %v503 = vpack.c.b16 %v439, %v438
    %568 = vmatpush.bf16.msra.mxu0 %v447
    %569 = vmatpush.bf16.msra.mxu0 %v446
    %570 = vmatpush.bf16.msra.mxu0 %v445
    %571 = vmatpush.bf16.msra.mxu0 %v444
    %572 = vmatpush.bf16.msra.mxu0 %v443
    %573 = vmatpush.bf16.msra.mxu0 %v442
    %574 = vmatpush.bf16.msra.mxu0 %v441
    %575 = vmatpush.bf16.msra.mxu0 %v440
    %576 = vmatmul.bf16.gmra.mxu0 %v48
    %v577 = vpop.f32.mrf.mxu0
    %v578 = vadd.f32 0.0, %v577
    %v579 = vpop.f32.mrf.mxu0
    %580 = vdwg.mxu0
    %581 = vmatpush.bf16.msra.mxu0 %v455
    %582 = vmatpush.bf16.msra.mxu0 %v454
    %583 = vmatpush.bf16.msra.mxu0 %v453
    %584 = vmatpush.bf16.msra.mxu0 %v452
    %585 = vmatpush.bf16.msra.mxu0 %v451
    %586 = vmatpush.bf16.msra.mxu0 %v450
    %587 = vmatpush.bf16.msra.mxu0 %v449
    %588 = vmatpush.bf16.msra.mxu0 %v448
    %589 = vmatmul.bf16.gmra.mxu0 %v49
    %v590 = vpop.f32.mrf.mxu0
    %v591 = vadd.f32 %v578, %v590
    %v592 = vpop.f32.mrf.mxu0
    %593 = vdwg.mxu0
    %594 = vmatpush.bf16.msra.mxu0 %v463
    %595 = vmatpush.bf16.msra.mxu0 %v462
    %596 = vmatpush.bf16.msra.mxu0 %v461
    %597 = vmatpush.bf16.msra.mxu0 %v460
    %598 = vmatpush.bf16.msra.mxu0 %v459
    %599 = vmatpush.bf16.msra.mxu0 %v458
    %600 = vmatpush.bf16.msra.mxu0 %v457
    %601 = vmatpush.bf16.msra.mxu0 %v456
    %602 = vmatmul.bf16.gmra.mxu0 %v50
    %v603 = vpop.f32.mrf.mxu0
    %v604 = vadd.f32 %v591, %v603
    %v605 = vpop.f32.mrf.mxu0
    %606 = vdwg.mxu0
    %607 = vmatpush.bf16.msra.mxu0 %v471
    %608 = vmatpush.bf16.msra.mxu0 %v470
    %609 = vmatpush.bf16.msra.mxu0 %v469
    %610 = vmatpush.bf16.msra.mxu0 %v468
    %611 = vmatpush.bf16.msra.mxu0 %v467
    %612 = vmatpush.bf16.msra.mxu0 %v466
    %613 = vmatpush.bf16.msra.mxu0 %v465
    %614 = vmatpush.bf16.msra.mxu0 %v464
    %615 = vmatmul.bf16.gmra.mxu0 %v51
    %v616 = vpop.f32.mrf.mxu0
    %v617 = vadd.f32 %v604, %v616
    %v618 = vpop.f32.mrf.mxu0
    %619 = vdwg.mxu0
    %620 = vmatpush.bf16.msra.mxu0 %v479
    %621 = vmatpush.bf16.msra.mxu0 %v478
    %622 = vmatpush.bf16.msra.mxu0 %v477
    %623 = vmatpush.bf16.msra.mxu0 %v476
    %624 = vmatpush.bf16.msra.mxu0 %v475
    %625 = vmatpush.bf16.msra.mxu0 %v474
    %626 = vmatpush.bf16.msra.mxu0 %v473
    %627 = vmatpush.bf16.msra.mxu0 %v472
    %628 = vmatmul.bf16.gmra.mxu0 %v52
    %v629 = vpop.f32.mrf.mxu0
    %v630 = vadd.f32 %v617, %v629
    %v631 = vpop.f32.mrf.mxu0
    %632 = vdwg.mxu0
    %633 = vmatpush.bf16.msra.mxu0 %v487
    %634 = vmatpush.bf16.msra.mxu0 %v486
    %635 = vmatpush.bf16.msra.mxu0 %v485
    %636 = vmatpush.bf16.msra.mxu0 %v484
    %637 = vmatpush.bf16.msra.mxu0 %v483
    %638 = vmatpush.bf16.msra.mxu0 %v482
    %639 = vmatpush.bf16.msra.mxu0 %v481
    %640 = vmatpush.bf16.msra.mxu0 %v480
    %641 = vmatmul.bf16.gmra.mxu0 %v53
    %v642 = vpop.f32.mrf.mxu0
    %v643 = vadd.f32 %v630, %v642
    %v644 = vpop.f32.mrf.mxu0
    %645 = vdwg.mxu0
    %646 = vmatpush.bf16.msra.mxu0 %v495
    %647 = vmatpush.bf16.msra.mxu0 %v494
    %648 = vmatpush.bf16.msra.mxu0 %v493
    %649 = vmatpush.bf16.msra.mxu0 %v492
    %650 = vmatpush.bf16.msra.mxu0 %v491
    %651 = vmatpush.bf16.msra.mxu0 %v490
    %652 = vmatpush.bf16.msra.mxu0 %v489
    %653 = vmatpush.bf16.msra.mxu0 %v488
    %654 = vmatmul.bf16.gmra.mxu0 %v54
    %v655 = vpop.f32.mrf.mxu0
    %v656 = vadd.f32 %v643, %v655
    %v657 = vpop.f32.mrf.mxu0
    %658 = vdwg.mxu0
    %659 = vmatpush.bf16.msra.mxu0 %v503
    %660 = vmatpush.bf16.msra.mxu0 %v502
    %661 = vmatpush.bf16.msra.mxu0 %v501
    %662 = vmatpush.bf16.msra.mxu0 %v500
    %663 = vmatpush.bf16.msra.mxu0 %v499
    %664 = vmatpush.bf16.msra.mxu0 %v498
    %665 = vmatpush.bf16.msra.mxu0 %v497
    %666 = vmatpush.bf16.msra.mxu0 %v496
    %667 = vmatmul.bf16.gmra.mxu0 %v55
    %v668 = vpop.f32.mrf.mxu0
    %v669 = vadd.f32 %v656, %v668
    %v670 = vpop.f32.mrf.mxu0
    %671 = vdwg.mxu0
    %v672 = vadd.f32 %v39, %v669
    %673 = vst [vmem:[%s3] sm:$0xff] %v672
    // Predicated region
    $region22: #{_flatten_linear_forward.1} parent=1 // pred_check
      _
    $region23: #{_flatten_linear_forward.1} parent=1 // pred_check_branch
      %675 = sbr.rel (0) target = $region25
    $region24: #{_flatten_linear_forward.1} parent=1 // pred_region
      _
    $region25: #{_flatten_linear_forward.1} parent=1 // pred_fallthru
      _
    // Predicated region
    $region26: #{_flatten_linear_forward.1} parent=1 // pred_check
      _
    $region27: #{_flatten_linear_forward.1} parent=1 // pred_check_branch
      %677 = sbr.rel (0) target = $region29
    $region28: #{_flatten_linear_forward.1} parent=1 // pred_region
      _
    $region29: #{_flatten_linear_forward.1} parent=1 // pred_fallthru
      _
    %678 = vsyncpa [#allocation3], 1

</llo_original>
